<compile_context>
chip_gen: v7x
topology: tpu7x:2x2x1
jax: 0.10.0
libtpu: 0.0.40
codegen_flags: <defaults>
</compile_context>

<pallas_src>
import functools

import numpy as np
import jax
import jax.numpy as jnp
from jax.experimental import pallas as pl
from jax.experimental.pallas import tpu as pltpu


def _round_up(x, m):
    return (x + m - 1) // m * m


def _sublane(itemsize):
    # 8 for 4-byte, 16 for 2-byte, 32 for 1-byte dtypes.
    return max(8, 32 // int(itemsize))


@functools.lru_cache(maxsize=None)
def _pool_matrix_np(H, W, out_hs):
    """(H*W, sum(out_hs)) matrix: PyTorch AdaptiveAvgPool2d((k,1)) bin weights
    for every k in out_hs, with the 1/W width-mean folded in."""
    cols = []
    for out_h in out_hs:
        for i in range(out_h):
            s = (i * H) // out_h
            e = -((-(i + 1) * H) // out_h)  # integer ceil == PyTorch bins
            col = np.zeros((H, W), dtype=np.float32)
            col[s:e, :] = 1.0 / ((e - s) * W)
            cols.append(col.reshape(H * W))
    return np.stack(cols, axis=1)  # (H*W, n_out_total)


def _make_kernel(n_tensors):
    def kernel(*refs):
        # refs = (x_1..x_n, P, o_1..o_n)
        x_refs = refs[:n_tensors]
        p_ref = refs[n_tensors]
        o_refs = refs[n_tensors + 1:]
        p = p_ref[...]
        for x_ref, o_ref in zip(x_refs, o_refs):
            o_ref[...] = jnp.dot(
                x_ref[...], p, preferred_element_type=jnp.float32
            ).astype(o_ref.dtype)
    return kernel


def _vmem_limit_bytes():
    cap = 128 << 20
    try:
        info = pltpu.get_tpu_info()
        cap = int(getattr(info, "vmem_capacity_bytes", cap) or cap)
    except Exception:
        pass
    # Leave >= half of physical VMEM as headroom; never ask for more than 48 MiB.
    return int(min(cap // 2, 48 << 20))


def _choose_tile(NC, HW, n_out, n_tensors, itemsize):
    sub = _sublane(itemsize)
    hw_pad = _round_up(HW, 128)
    nout_pad = _round_up(n_out, 128)
    vmem_limit = _vmem_limit_bytes()
    # Budget with lane-padded shapes, double buffering, and a compiler margin.
    p_bytes = 2 * hw_pad * nout_pad * 4
    budget = vmem_limit - p_bytes - (4 << 20)
    per_row = 2 * n_tensors * (hw_pad + nout_pad) * itemsize
    tile = max(sub, (budget // per_row) // sub * sub)
    # Keep >= ~8 grid steps so DMA pipelining and v7x's two cores stay busy.
    if NC > 8 * sub:
        tile = min(tile, _round_up(-(-NC // 8), sub))
    tile = min(tile, _round_up(NC, sub))
    return tile, vmem_limit


def fused_adaptive_avg_pool2d(tensors, out_hs):
    """nn.AdaptiveAvgPool2d((k, 1)) for every k in out_hs, applied to every
    tensor in `tensors` (all same shape & dtype), in ONE pallas_call / one HBM
    pass per tensor.  Returns a list (per tensor) of tuples (per k) of
    (N, C, k, 1) arrays."""
    tensors = list(tensors)
    n_t = len(tensors)
    N, C, H, W = tensors[0].shape
    dtype = tensors[0].dtype
    NC, HW = N * C, H * W
    out_hs = tuple(int(k) for k in out_hs)
    n_out = int(sum(out_hs))
    itemsize = jnp.dtype(dtype).itemsize

    P = jnp.asarray(_pool_matrix_np(H, W, out_hs))  # f32; bf16 x promoted in-dot
    xs = [t.reshape(NC, HW) for t in tensors]

    tile, vmem_limit = _choose_tile(NC, HW, n_out, n_t, itemsize)
    grid = (pl.cdiv(NC, tile),)  # ragged last block handled by Pallas, no pad

    in_specs = [pl.BlockSpec((tile, HW), lambda i: (i, 0)) for _ in range(n_t)]
    in_specs.append(pl.BlockSpec((HW, n_out), lambda i: (0, 0)))
    out_specs = [pl.BlockSpec((tile, n_out), lambda i: (i, 0)) for _ in range(n_t)]
    out_shape = [jax.ShapeDtypeStruct((NC, n_out), dtype) for _ in range(n_t)]

    cost = pl.CostEstimate(
        flops=2 * n_t * NC * HW * n_out,
        transcendentals=0,
        bytes_accessed=n_t * NC * (HW + n_out) * itemsize + HW * n_out * 4,
    )

    outs = pl.pallas_call(
        _make_kernel(n_t),
        out_shape=out_shape,
        grid=grid,
        in_specs=in_specs,
        out_specs=out_specs,
        compiler_params=pltpu.CompilerParams(
            dimension_semantics=("parallel",),
            vmem_limit_bytes=vmem_limit,
        ),
        cost_estimate=cost,
    )(*xs, P)

    results = []
    for o in outs:
        per_k, off = [], 0
        for k in out_hs:
            per_k.append(o[:, off:off + k].reshape(N, C, k, 1))
            off += k
        results.append(tuple(per_k))
    return results


class AMGNPooling:
    """JAX/Pallas port of the PyTorch AMGNPooling neck (no weights)."""

    def __init__(self, num_inputs=4, num2=2, num3=3):
        self.num_inputs = num_inputs
        self.num2 = num2
        self.num3 = num3

    def __call__(self, inputs):
        assert isinstance(inputs, (list, tuple))
        assert len(inputs) == self.num_inputs
        p1, p2, p3, a1 = inputs[0], inputs[1], inputs[2], inputs[3]

        same = (p1.shape == p2.shape == p3.shape
                and p1.dtype == p2.dtype == p3.dtype)
        if same:
            # One launch, one pipeline, all three tensors streamed once each.
            r1, r2, r3 = fused_adaptive_avg_pool2d(
                (p1, p2, p3), (1, self.num2, self.num3))
            p1_global = r1[0]
            p2_global, p2_parts = r2[0], r2[1]
            p3_global, p3_parts = r3[0], r3[2]
        else:
            # Fallback (shapes differ): one launch per tensor, pools still fused.
            (r1,) = fused_adaptive_avg_pool2d((p1,), (1,))
            (r2,) = fused_adaptive_avg_pool2d((p2,), (1, self.num2))
            (r3,) = fused_adaptive_avg_pool2d((p3,), (1, self.num3))
            p1_global = r1[0]
            p2_global, p2_parts = r2
            p3_global, p3_parts = r3

        return (p1_global, p2_global, p3_global, p2_parts, p3_parts, a1)


def _ref_adaptive_avg_pool2d(x, out_h):
    # Pure-JAX reference with PyTorch-exact integer bin boundaries.
    _, _, H, _ = x.shape
    outs = []
    for i in range(out_h):
        s = (i * H) // out_h
        e = -((-(i + 1) * H) // out_h)
        outs.append(jnp.mean(x[:, :, s:e, :], axis=(2, 3), keepdims=True))
    return jnp.concatenate(outs, axis=2)


if __name__ == "__main__":
    key = jax.random.PRNGKey(0)
    k1, k2, k3, k4 = jax.random.split(key, 4)
    N, C, H, W = 2, 4, 16, 16
    p1 = jax.random.normal(k1, (N, C, H, W), dtype=jnp.float32)
    p2 = jax.random.normal(k2, (N, C, H, W), dtype=jnp.float32)
    p3 = jax.random.normal(k3, (N, C, H, W), dtype=jnp.float32)
    a1 = jax.random.normal(k4, (N, C, H, W), dtype=jnp.float32)

    neck = AMGNPooling(num_inputs=4, num2=2, num3=3)
    outs = jax.block_until_ready(neck((p1, p2, p3, a1)))

    refs = (
        _ref_adaptive_avg_pool2d(p1, 1),
        _ref_adaptive_avg_pool2d(p2, 1),
        _ref_adaptive_avg_pool2d(p3, 1),
        _ref_adaptive_avg_pool2d(p2, 2),
        _ref_adaptive_avg_pool2d(p3, 3),
        a1,
    )
    for o, r in zip(outs, refs):
        assert o.shape == r.shape, (o.shape, r.shape)
        err = float(jnp.max(jnp.abs(o.astype(jnp.float32) - r.astype(jnp.float32))))
        assert err < 1e-5, err

    print("KERNEL_OK")
</pallas_src>

<mosaic_0001>
module attributes {stable_mosaic.version = 11 : i64} {
  func.func @kernel(%arg0: i32, %arg1: memref<8x256xf32, #tpu.memory_space<vmem>>, %arg2: memref<8x256xf32, #tpu.memory_space<vmem>>, %arg3: memref<8x256xf32, #tpu.memory_space<vmem>>, %arg4: memref<256x6xf32, #tpu.memory_space<vmem>>, %arg5: memref<8x6xf32, #tpu.memory_space<vmem>>, %arg6: memref<8x6xf32, #tpu.memory_space<vmem>>, %arg7: memref<8x6xf32, #tpu.memory_space<vmem>>) attributes {dimension_semantics = [#tpu.dimension_semantics<parallel>], iteration_bounds = array<i64: 1>, scalar_prefetch = 0 : i64, scratch_operands = 0 : i64, tpu.core_type = #tpu.core_type<tc>, window_params = [{transform_indices = @transform_0, window_bounds = array<i64: 8, 256>}, {transform_indices = @transform_1, window_bounds = array<i64: 8, 256>}, {transform_indices = @transform_2, window_bounds = array<i64: 8, 256>}, {pipeline_mode = #tpu.pipeline_mode<synchronous>, transform_indices = @transform_3, window_bounds = array<i64: 256, 6>}, {transform_indices = @transform_4, window_bounds = array<i64: 8, 6>}, {transform_indices = @transform_5, window_bounds = array<i64: 8, 6>}, {transform_indices = @transform_6, window_bounds = array<i64: 8, 6>}]} {
    %c0 = arith.constant 0 : index
    %c0_0 = arith.constant 0 : index
    %0 = vector.load %arg4[%c0, %c0_0] : memref<256x6xf32, #tpu.memory_space<vmem>>, vector<256x6xf32>
    %c0_1 = arith.constant 0 : index
    %c0_2 = arith.constant 0 : index
    %1 = vector.load %arg1[%c0_1, %c0_2] : memref<8x256xf32, #tpu.memory_space<vmem>>, vector<8x256xf32>
    %cst = arith.constant dense<0.000000e+00> : vector<8x6xf32>
    %2 = tpu.matmul %1, %0, %cst {dimension_numbers = #tpu.dot_dimension_numbers<[1], [0], [0], [1], [0, 0, 1, 1], [], []>} : vector<8x256xf32>, vector<256x6xf32>, vector<8x6xf32> -> vector<8x6xf32>
    %c0_3 = arith.constant 0 : index
    %c0_4 = arith.constant 0 : index
    %3 = vector.load %arg5[%c0_3, %c0_4] : memref<8x6xf32, #tpu.memory_space<vmem>>, vector<8x6xf32>
    tpu.vector_store %arg5[%c0_3, %c0_4], %2 {strides = array<i32>} : memref<8x6xf32, #tpu.memory_space<vmem>>, vector<8x6xf32>,
    %c0_5 = arith.constant 0 : index
    %c0_6 = arith.constant 0 : index
    %4 = vector.load %arg2[%c0_5, %c0_6] : memref<8x256xf32, #tpu.memory_space<vmem>>, vector<8x256xf32>
    %cst_7 = arith.constant dense<0.000000e+00> : vector<8x6xf32>
    %5 = tpu.matmul %4, %0, %cst_7 {dimension_numbers = #tpu.dot_dimension_numbers<[1], [0], [0], [1], [0, 0, 1, 1], [], []>} : vector<8x256xf32>, vector<256x6xf32>, vector<8x6xf32> -> vector<8x6xf32>
    %c0_8 = arith.constant 0 : index
    %c0_9 = arith.constant 0 : index
    %6 = vector.load %arg6[%c0_8, %c0_9] : memref<8x6xf32, #tpu.memory_space<vmem>>, vector<8x6xf32>
    tpu.vector_store %arg6[%c0_8, %c0_9], %5 {strides = array<i32>} : memref<8x6xf32, #tpu.memory_space<vmem>>, vector<8x6xf32>,
    %c0_10 = arith.constant 0 : index
    %c0_11 = arith.constant 0 : index
    %7 = vector.load %arg3[%c0_10, %c0_11] : memref<8x256xf32, #tpu.memory_space<vmem>>, vector<8x256xf32>
    %cst_12 = arith.constant dense<0.000000e+00> : vector<8x6xf32>
    %8 = tpu.matmul %7, %0, %cst_12 {dimension_numbers = #tpu.dot_dimension_numbers<[1], [0], [0], [1], [0, 0, 1, 1], [], []>} : vector<8x256xf32>, vector<256x6xf32>, vector<8x6xf32> -> vector<8x6xf32>
    %c0_13 = arith.constant 0 : index
    %c0_14 = arith.constant 0 : index
    %9 = vector.load %arg7[%c0_13, %c0_14] : memref<8x6xf32, #tpu.memory_space<vmem>>, vector<8x6xf32>
    tpu.vector_store %arg7[%c0_13, %c0_14], %8 {strides = array<i32>} : memref<8x6xf32, #tpu.memory_space<vmem>>, vector<8x6xf32>,
    return
  }
  func.func @transform_0(%arg0: i32) -> (i32, i32) {
    %c0_i32 = arith.constant 0 : i32
    %c0_i32_0 = arith.constant 0 : i32
    return %arg0, %c0_i32 : i32, i32
  }
  func.func @transform_1(%arg0: i32) -> (i32, i32) {
    %c0_i32 = arith.constant 0 : i32
    %c0_i32_0 = arith.constant 0 : i32
    return %arg0, %c0_i32 : i32, i32
  }
  func.func @transform_2(%arg0: i32) -> (i32, i32) {
    %c0_i32 = arith.constant 0 : i32
    %c0_i32_0 = arith.constant 0 : i32
    return %arg0, %c0_i32 : i32, i32
  }
  func.func @transform_3(%arg0: i32) -> (i32, i32) {
    %c0_i32 = arith.constant 0 : i32
    %c0_i32_0 = arith.constant 0 : i32
    %c0_i32_1 = arith.constant 0 : i32
    return %c0_i32, %c0_i32_0 : i32, i32
  }
  func.func @transform_4(%arg0: i32) -> (i32, i32) {
    %c0_i32 = arith.constant 0 : i32
    %c0_i32_0 = arith.constant 0 : i32
    return %arg0, %c0_i32 : i32, i32
  }
  func.func @transform_5(%arg0: i32) -> (i32, i32) {
    %c0_i32 = arith.constant 0 : i32
    %c0_i32_0 = arith.constant 0 : i32
    return %arg0, %c0_i32 : i32, i32
  }
  func.func @transform_6(%arg0: i32) -> (i32, i32) {
    %c0_i32 = arith.constant 0 : i32
    %c0_i32_0 = arith.constant 0 : i32
    return %arg0, %c0_i32 : i32, i32
  }
}

</mosaic_0001>

<llo_original>
// kernel: tpu_custom_call.1
$region0: #{tpu_custom_call.1}
  #allocation0 [shape = 'u32[]', space=smem, size = 0x4, offset = 0x4, fixed_abs, tag = 'smem constant byte address 0x4 - core index']
  #allocation1 [shape = 'u32[144,128]{1,0:T(1,128)}', space=vmem, size = 0x12000, scoped, tag = 'internal scratch']
  %s0 = inlined_call_operand.vmem [shape: f32[8,256], index: 0, kind: input, shape index: {}]
  %s1 = inlined_call_operand.vmem [shape: f32[8,256], index: 1, kind: input, shape index: {}]
  %s2 = inlined_call_operand.vmem [shape: f32[8,256], index: 2, kind: input, shape index: {}]
  %s3 = inlined_call_operand.vmem [shape: f32[256,6], index: 3, kind: input, shape index: {}]
  %s4 = inlined_call_operand.hbm [shape: f32[8,6], index: 4, kind: output, shape index: {0}]
  %s5 = inlined_call_operand.hbm [shape: f32[8,6], index: 5, kind: output, shape index: {1}]
  %s6 = inlined_call_operand.hbm [shape: f32[8,6], index: 6, kind: output, shape index: {2}]
  %7 = xla_tuple %s4, %s5, %s6
  %s8 = sld [smem:[#allocation0]]
  $region42: #{tpu_custom_call.1} parent=0
    _
  %s10 = ssub.s32 1, %s8
  %s11 = scalar_select 0, %s10, %s8
  $region1: #{tpu_custom_call.1} parent=0
    #allocation2 [shape = 'u8[4096]{0}', space=vmem, size = 0x1000, scoped, tag = 'output window, operand 0, single buffered']
    #allocation3 [shape = 's32[1]{0}', space=sflag, size = 0x4, scoped, tag = 'scoped memory for tpu_custom_call.1']
    #allocation4 [shape = 'u8[4096]{0}', space=vmem, size = 0x1000, scoped, tag = 'output window, operand 1, single buffered']
    #allocation5 [shape = 's32[1]{0}', space=sflag, size = 0x4, scoped, tag = 'scoped memory for tpu_custom_call.1']
    #allocation6 [shape = 'u8[4096]{0}', space=vmem, size = 0x1000, scoped, tag = 'output window, operand 2, single buffered']
    %12 = vsyncpa [#allocation3], 0
    %13 = vsyncpa [#allocation5], 0
    // Predicated region
    $region2: #{tpu_custom_call.1} parent=1 // pred_check
      _
    $region3: #{tpu_custom_call.1} parent=1 // pred_check_branch
      %15 = sbr.rel (0) target = $region5
    $region4: #{tpu_custom_call.1} parent=1 // pred_region
      _
    $region5: #{tpu_custom_call.1} parent=1 // pred_fallthru
      _
    // Predicated region
    $region6: #{tpu_custom_call.1} parent=1 // pred_check
      _
    $region7: #{tpu_custom_call.1} parent=1 // pred_check_branch
      %17 = sbr.rel (0) target = $region9
    $region8: #{tpu_custom_call.1} parent=1 // pred_region
      _
    $region9: #{tpu_custom_call.1} parent=1 // pred_fallthru
      _
    // Predicated region
    $region10: #{tpu_custom_call.1} parent=1 // pred_check
      _
    $region11: #{tpu_custom_call.1} parent=1 // pred_check_branch
      %19 = sbr.rel (0) target = $region13
    $region12: #{tpu_custom_call.1} parent=1 // pred_region
      _
    $region13: #{tpu_custom_call.1} parent=1 // pred_fallthru
      _
    // Predicated region
    $region14: #{tpu_custom_call.1} parent=1 // pred_check
      _
    $region15: #{tpu_custom_call.1} parent=1 // pred_check_branch
      %21 = sbr.rel (0) target = $region17
    $region16: #{tpu_custom_call.1} parent=1 // pred_region
      _
    $region17: #{tpu_custom_call.1} parent=1 // pred_fallthru
      _
    %v22 = vld [vmem:[%s3] sm:$0xff]
    %v23 = vld [vmem:[%s3 + $0x8] sm:$0xff]
    %v24 = vld [vmem:[%s3 + $0x10] sm:$0xff]
    %v25 = vld [vmem:[%s3 + $0x18] sm:$0xff]
    %v26 = vld [vmem:[%s3 + $0x20] sm:$0xff]
    %v27 = vld [vmem:[%s3 + $0x28] sm:$0xff]
    %v28 = vld [vmem:[%s3 + $0x30] sm:$0xff]
    %v29 = vld [vmem:[%s3 + $0x38] sm:$0xff]
    %v30 = vld [vmem:[%s3 + $0x40] sm:$0xff]
    %v31 = vld [vmem:[%s3 + $0x48] sm:$0xff]
    %v32 = vld [vmem:[%s3 + $0x50] sm:$0xff]
    %v33 = vld [vmem:[%s3 + $0x58] sm:$0xff]
    %v34 = vld [vmem:[%s3 + $0x60] sm:$0xff]
    %v35 = vld [vmem:[%s3 + $0x68] sm:$0xff]
    %v36 = vld [vmem:[%s3 + $0x70] sm:$0xff]
    %v37 = vld [vmem:[%s3 + $0x78] sm:$0xff]
    %v38 = vld [vmem:[%s3 + $0x80] sm:$0xff]
    %v39 = vld [vmem:[%s3 + $0x88] sm:$0xff]
    %v40 = vld [vmem:[%s3 + $0x90] sm:$0xff]
    %v41 = vld [vmem:[%s3 + $0x98] sm:$0xff]
    %v42 = vld [vmem:[%s3 + $0xa0] sm:$0xff]
    %v43 = vld [vmem:[%s3 + $0xa8] sm:$0xff]
    %v44 = vld [vmem:[%s3 + $0xb0] sm:$0xff]
    %v45 = vld [vmem:[%s3 + $0xb8] sm:$0xff]
    %v46 = vld [vmem:[%s3 + $0xc0] sm:$0xff]
    %v47 = vld [vmem:[%s3 + $0xc8] sm:$0xff]
    %v48 = vld [vmem:[%s3 + $0xd0] sm:$0xff]
    %v49 = vld [vmem:[%s3 + $0xd8] sm:$0xff]
    %v50 = vld [vmem:[%s3 + $0xe0] sm:$0xff]
    %v51 = vld [vmem:[%s3 + $0xe8] sm:$0xff]
    %v52 = vld [vmem:[%s3 + $0xf0] sm:$0xff]
    %v53 = vld [vmem:[%s3 + $0xf8] sm:$0xff]
    %v54 = vld [vmem:[%s0] sm:$0xff]
    %v55 = vld [vmem:[%s0 + $0x8] sm:$0xff]
    %56 = vmatprep.subr.mxu0 0.0
    %57 = vmatpush1.msra.mxu0 %v22
    %58 = vmatprep.subr.mxu0 0.0
    %59 = vmatpush1.msra.mxu0 %v23
    %60 = vmatprep.subr.mxu0 0.0
    %61 = vmatpush1.msra.mxu0 %v24
    %62 = vmatprep.subr.mxu0 0.0
    %63 = vmatpush1.msra.mxu0 %v25
    %64 = vmatprep.subr.mxu0 0.0
    %65 = vmatpush1.msra.mxu0 %v26
    %66 = vmatprep.subr.mxu0 0.0
    %67 = vmatpush1.msra.mxu0 %v27
    %68 = vmatprep.subr.mxu0 0.0
    %69 = vmatpush1.msra.mxu0 %v28
    %70 = vmatprep.subr.mxu0 0.0
    %71 = vmatpush1.msra.mxu0 %v29
    %72 = vmatprep.subr.mxu0 0.0
    %73 = vmatpush1.msra.mxu0 %v30
    %74 = vmatprep.subr.mxu0 0.0
    %75 = vmatpush1.msra.mxu0 %v31
    %76 = vmatprep.subr.mxu0 0.0
    %77 = vmatpush1.msra.mxu0 %v32
    %78 = vmatprep.subr.mxu0 0.0
    %79 = vmatpush1.msra.mxu0 %v33
    %80 = vmatprep.subr.mxu0 0.0
    %81 = vmatpush1.msra.mxu0 %v34
    %82 = vmatprep.subr.mxu0 0.0
    %83 = vmatpush1.msra.mxu0 %v35
    %84 = vmatprep.subr.mxu0 0.0
    %85 = vmatpush1.msra.mxu0 %v36
    %86 = vmatprep.subr.mxu0 0.0
    %87 = vmatpush1.msra.mxu0 %v37
    %88 = vmatprep.subr.mxu0 0.0
    %89 = vmatpush1.msra.mxu0 %v38
    %90 = vmatprep.subr.mxu0 0.0
    %91 = vmatpush1.msra.mxu0 %v39
    %92 = vmatprep.subr.mxu0 0.0
    %93 = vmatpush1.msra.mxu0 %v40
    %94 = vmatprep.subr.mxu0 0.0
    %95 = vmatpush1.msra.mxu0 %v41
    %96 = vmatprep.subr.mxu0 0.0
    %97 = vmatpush1.msra.mxu0 %v42
    %98 = vmatprep.subr.mxu0 0.0
    %99 = vmatpush1.msra.mxu0 %v43
    %100 = vmatprep.subr.mxu0 0.0
    %101 = vmatpush1.msra.mxu0 %v44
    %102 = vmatprep.subr.mxu0 0.0
    %103 = vmatpush1.msra.mxu0 %v45
    %104 = vmatprep.subr.mxu0 0.0
    %105 = vmatpush1.msra.mxu0 %v46
    %106 = vmatprep.subr.mxu0 0.0
    %107 = vmatpush1.msra.mxu0 %v47
    %108 = vmatprep.subr.mxu0 0.0
    %109 = vmatpush1.msra.mxu0 %v48
    %110 = vmatprep.subr.mxu0 0.0
    %111 = vmatpush1.msra.mxu0 %v49
    %112 = vmatprep.subr.mxu0 0.0
    %113 = vmatpush1.msra.mxu0 %v50
    %114 = vmatprep.subr.mxu0 0.0
    %115 = vmatpush1.msra.mxu0 %v51
    %116 = vmatprep.subr.mxu0 0.0
    %117 = vmatpush1.msra.mxu0 %v52
    %118 = vmatprep.subr.mxu0 0.0
    %119 = vmatpush1.msra.mxu0 %v53
    %120 = vmatprep.mubr.f32.mxu0 %v55
    %121 = vmatmul.mubr.f32.gmra.mrb[0].mxu0 %v54
    %v122 = vpop.f32.mrb[0].mxu0
    %v123 = vadd.f32 0.0, %v122
    %v124 = vpop.f32.mrb[0].mxu0
    %125 = vdwg.mxu0
    %vm126 = vcmask 48128
    %127 = vst.msk [vmem:[#allocation2] sm:$0xff] %vm126, %v123
    %v128 = vld [vmem:[%s1] sm:$0xff]
    %v129 = vld [vmem:[%s1 + $0x8] sm:$0xff]
    %130 = vmatprep.subr.mxu0 0.0
    %131 = vmatpush1.msra.mxu0 %v22
    %132 = vmatprep.subr.mxu0 0.0
    %133 = vmatpush1.msra.mxu0 %v23
    %134 = vmatprep.subr.mxu0 0.0
    %135 = vmatpush1.msra.mxu0 %v24
    %136 = vmatprep.subr.mxu0 0.0
    %137 = vmatpush1.msra.mxu0 %v25
    %138 = vmatprep.subr.mxu0 0.0
    %139 = vmatpush1.msra.mxu0 %v26
    %140 = vmatprep.subr.mxu0 0.0
    %141 = vmatpush1.msra.mxu0 %v27
    %142 = vmatprep.subr.mxu0 0.0
    %143 = vmatpush1.msra.mxu0 %v28
    %144 = vmatprep.subr.mxu0 0.0
    %145 = vmatpush1.msra.mxu0 %v29
    %146 = vmatprep.subr.mxu0 0.0
    %147 = vmatpush1.msra.mxu0 %v30
    %148 = vmatprep.subr.mxu0 0.0
    %149 = vmatpush1.msra.mxu0 %v31
    %150 = vmatprep.subr.mxu0 0.0
    %151 = vmatpush1.msra.mxu0 %v32
    %152 = vmatprep.subr.mxu0 0.0
    %153 = vmatpush1.msra.mxu0 %v33
    %154 = vmatprep.subr.mxu0 0.0
    %155 = vmatpush1.msra.mxu0 %v34
    %156 = vmatprep.subr.mxu0 0.0
    %157 = vmatpush1.msra.mxu0 %v35
    %158 = vmatprep.subr.mxu0 0.0
    %159 = vmatpush1.msra.mxu0 %v36
    %160 = vmatprep.subr.mxu0 0.0
    %161 = vmatpush1.msra.mxu0 %v37
    %162 = vmatprep.subr.mxu0 0.0
    %163 = vmatpush1.msra.mxu0 %v38
    %164 = vmatprep.subr.mxu0 0.0
    %165 = vmatpush1.msra.mxu0 %v39
    %166 = vmatprep.subr.mxu0 0.0
    %167 = vmatpush1.msra.mxu0 %v40
    %168 = vmatprep.subr.mxu0 0.0
    %169 = vmatpush1.msra.mxu0 %v41
    %170 = vmatprep.subr.mxu0 0.0
    %171 = vmatpush1.msra.mxu0 %v42
    %172 = vmatprep.subr.mxu0 0.0
    %173 = vmatpush1.msra.mxu0 %v43
    %174 = vmatprep.subr.mxu0 0.0
    %175 = vmatpush1.msra.mxu0 %v44
    %176 = vmatprep.subr.mxu0 0.0
    %177 = vmatpush1.msra.mxu0 %v45
    %178 = vmatprep.subr.mxu0 0.0
    %179 = vmatpush1.msra.mxu0 %v46
    %180 = vmatprep.subr.mxu0 0.0
    %181 = vmatpush1.msra.mxu0 %v47
    %182 = vmatprep.subr.mxu0 0.0
    %183 = vmatpush1.msra.mxu0 %v48
    %184 = vmatprep.subr.mxu0 0.0
    %185 = vmatpush1.msra.mxu0 %v49
    %186 = vmatprep.subr.mxu0 0.0
    %187 = vmatpush1.msra.mxu0 %v50
    %188 = vmatprep.subr.mxu0 0.0
    %189 = vmatpush1.msra.mxu0 %v51
    %190 = vmatprep.subr.mxu0 0.0
    %191 = vmatpush1.msra.mxu0 %v52
    %192 = vmatprep.subr.mxu0 0.0
    %193 = vmatpush1.msra.mxu0 %v53
    %194 = vmatprep.mubr.f32.mxu0 %v129
    %195 = vmatmul.mubr.f32.gmra.mrb[0].mxu0 %v128
    %v196 = vpop.f32.mrb[0].mxu0
    %v197 = vadd.f32 0.0, %v196
    %v198 = vpop.f32.mrb[0].mxu0
    %199 = vdwg.mxu0
    %200 = vst.msk [vmem:[#allocation4] sm:$0xff] %vm126, %v197
    %v201 = vld [vmem:[%s2] sm:$0xff]
    %v202 = vld [vmem:[%s2 + $0x8] sm:$0xff]
    %203 = vmatprep.subr.mxu0 0.0
    %204 = vmatpush1.msra.mxu0 %v22
    %205 = vmatprep.subr.mxu0 0.0
    %206 = vmatpush1.msra.mxu0 %v23
    %207 = vmatprep.subr.mxu0 0.0
    %208 = vmatpush1.msra.mxu0 %v24
    %209 = vmatprep.subr.mxu0 0.0
    %210 = vmatpush1.msra.mxu0 %v25
    %211 = vmatprep.subr.mxu0 0.0
    %212 = vmatpush1.msra.mxu0 %v26
    %213 = vmatprep.subr.mxu0 0.0
    %214 = vmatpush1.msra.mxu0 %v27
    %215 = vmatprep.subr.mxu0 0.0
    %216 = vmatpush1.msra.mxu0 %v28
    %217 = vmatprep.subr.mxu0 0.0
    %218 = vmatpush1.msra.mxu0 %v29
    %219 = vmatprep.subr.mxu0 0.0
    %220 = vmatpush1.msra.mxu0 %v30
    %221 = vmatprep.subr.mxu0 0.0
    %222 = vmatpush1.msra.mxu0 %v31
    %223 = vmatprep.subr.mxu0 0.0
    %224 = vmatpush1.msra.mxu0 %v32
    %225 = vmatprep.subr.mxu0 0.0
    %226 = vmatpush1.msra.mxu0 %v33
    %227 = vmatprep.subr.mxu0 0.0
    %228 = vmatpush1.msra.mxu0 %v34
    %229 = vmatprep.subr.mxu0 0.0
    %230 = vmatpush1.msra.mxu0 %v35
    %231 = vmatprep.subr.mxu0 0.0
    %232 = vmatpush1.msra.mxu0 %v36
    %233 = vmatprep.subr.mxu0 0.0
    %234 = vmatpush1.msra.mxu0 %v37
    %235 = vmatprep.subr.mxu0 0.0
    %236 = vmatpush1.msra.mxu0 %v38
    %237 = vmatprep.subr.mxu0 0.0
    %238 = vmatpush1.msra.mxu0 %v39
    %239 = vmatprep.subr.mxu0 0.0
    %240 = vmatpush1.msra.mxu0 %v40
    %241 = vmatprep.subr.mxu0 0.0
    %242 = vmatpush1.msra.mxu0 %v41
    %243 = vmatprep.subr.mxu0 0.0
    %244 = vmatpush1.msra.mxu0 %v42
    %245 = vmatprep.subr.mxu0 0.0
    %246 = vmatpush1.msra.mxu0 %v43
    %247 = vmatprep.subr.mxu0 0.0
    %248 = vmatpush1.msra.mxu0 %v44
    %249 = vmatprep.subr.mxu0 0.0
    %250 = vmatpush1.msra.mxu0 %v45
    %251 = vmatprep.subr.mxu0 0.0
    %252 = vmatpush1.msra.mxu0 %v46
    %253 = vmatprep.subr.mxu0 0.0
    %254 = vmatpush1.msra.mxu0 %v47
    %255 = vmatprep.subr.mxu0 0.0
    %256 = vmatpush1.msra.mxu0 %v48
    %257 = vmatprep.subr.mxu0 0.0
    %258 = vmatpush1.msra.mxu0 %v49
    %259 = vmatprep.subr.mxu0 0.0
    %260 = vmatpush1.msra.mxu0 %v50
    %261 = vmatprep.subr.mxu0 0.0
    %262 = vmatpush1.msra.mxu0 %v51
    %263 = vmatprep.subr.mxu0 0.0
    %264 = vmatpush1.msra.mxu0 %v52
    %265 = vmatprep.subr.mxu0 0.0
    %266 = vmatpush1.msra.mxu0 %v53
    %267 = vmatprep.mubr.f32.mxu0 %v202
    %268 = vmatmul.mubr.f32.gmra.mrb[0].mxu0 %v201
    %v269 = vpop.f32.mrb[0].mxu0
    %v270 = vadd.f32 0.0, %v269
    %v271 = vpop.f32.mrb[0].mxu0
    %272 = vdwg.mxu0
    %273 = vst.msk [vmem:[#allocation6] sm:$0xff] %vm126, %v270
    // Predicated region
    $region18: #{tpu_custom_call.1} parent=1 // pred_check
      _
    $region19: #{tpu_custom_call.1} parent=1 // pred_check_branch
      %275 = sbr.rel (0) target = $region21
    $region20: #{tpu_custom_call.1} parent=1 // pred_region
      %s277 = ssub.s32 128, 128
      %278 = vsyncadd [#allocation3], %s277
      %s280 = sshll.u32 [#allocation2], 4
      %s281 = int_to_ptr.vmem [resolvable:$true] %s280
      %283 = dma.vmem_to_hbm [thread:$0]  %s281, 128, %s4, [#allocation3]
    $region21: #{tpu_custom_call.1} parent=1 // pred_fallthru
      _
    // Predicated region
    $region22: #{tpu_custom_call.1} parent=1 // pred_check
      _
    $region23: #{tpu_custom_call.1} parent=1 // pred_check_branch
      %285 = sbr.rel (0) target = $region25
    $region24: #{tpu_custom_call.1} parent=1 // pred_region
      %s287 = ssub.s32 128, 128
      %288 = vsyncadd [#allocation5], %s287
      %s290 = sshll.u32 [#allocation4], 4
      %s291 = int_to_ptr.vmem [resolvable:$true] %s290
      %293 = dma.vmem_to_hbm [thread:$0]  %s291, 128, %s5, [#allocation5]
    $region25: #{tpu_custom_call.1} parent=1 // pred_fallthru
      _
    // Predicated region
    $region26: #{tpu_custom_call.1} parent=1 // pred_check
      _
    $region27: #{tpu_custom_call.1} parent=1 // pred_check_branch
      %295 = sbr.rel (0) target = $region29
    $region28: #{tpu_custom_call.1} parent=1 // pred_region
      %s297 = ssub.s32 128, 128
      %298 = vsyncadd [#allocation5], %s297
      %s300 = sshll.u32 [#allocation6], 4
      %s301 = int_to_ptr.vmem [resolvable:$true] %s300
      %303 = dma.vmem_to_hbm [thread:$0]  %s301, 128, %s6, [#allocation5]
    $region29: #{tpu_custom_call.1} parent=1 // pred_fallthru
      _
    // Predicated region
    $region30: #{tpu_custom_call.1} parent=1 // pred_check
      _
    $region31: #{tpu_custom_call.1} parent=1 // pred_check_branch
      %305 = sbr.rel (0) target = $region33
    $region32: #{tpu_custom_call.1} parent=1 // pred_region
      %306 = dma.done [#allocation3], 128
    $region33: #{tpu_custom_call.1} parent=1 // pred_fallthru
      _
    // Predicated region
    $region34: #{tpu_custom_call.1} parent=1 // pred_check
      _
    $region35: #{tpu_custom_call.1} parent=1 // pred_check_branch
      %308 = sbr.rel (0) target = $region37
    $region36: #{tpu_custom_call.1} parent=1 // pred_region
      %309 = dma.done [#allocation5], 128
    $region37: #{tpu_custom_call.1} parent=1 // pred_fallthru
      _
    // Predicated region
    $region38: #{tpu_custom_call.1} parent=1 // pred_check
      _
    $region39: #{tpu_custom_call.1} parent=1 // pred_check_branch
      %311 = sbr.rel (0) target = $region41
    $region40: #{tpu_custom_call.1} parent=1 // pred_region
      %312 = dma.done [#allocation5], 128
    $region41: #{tpu_custom_call.1} parent=1 // pred_fallthru
      _
    %313 = vsyncpa [#allocation3], 1
    %314 = vsyncpa [#allocation5], 1

</llo_original>
